<compile_context>
chip_gen: v5e
topology: v5e:2x2
jax: 0.10.0
libtpu: 0.0.40
codegen_flags: <defaults>
</compile_context>

<pallas_src>
import functools

import jax
import jax.numpy as jnp
from jax.experimental import pallas as pl
from jax.experimental.pallas import tpu as pltpu

EPS = 1e-5  # PyTorch BatchNorm2d default


def _dilated_conv_kernel(x_ref, wmask_ref, w11_ref, bias_ref, out_ref, *,
                         width, pad, use_mxu, mxu_dtype):
    # x_ref    : (Cin, H*W)     one image in native NCHW order (channels on
    #                           sublanes, flattened pixels on lanes).
    # wmask_ref: (9, Cin, H*W)  depthwise 3x3 tap weights with BN1 scale and
    #                           the 'same'-padding boundary masks folded in.
    # w11_ref  : (Cout, Cin)    1x1 conv weights with BN2 scale folded in.
    # bias_ref : (Cout, 1)      fully folded bias (dw bias, BN1, 1x1 bias, BN2).
    # out_ref  : (Cout, H*W)    one output image, lane dense.
    cin, hw = x_ref.shape
    cout = out_ref.shape[0]

    # Lane-pad the image once in VMEM (128-lane aligned pieces -> cheap concat)
    # so every 3x3 tap becomes a static lane-offset slice of a single value.
    # Taps that fall outside the image read the zero pad or a wrapped
    # neighbour pixel and are zeroed by the mask pre-multiplied into wmask.
    x = x_ref[...]
    zpad = jnp.zeros((cin, pad), x.dtype)
    xp = jnp.concatenate([zpad, x, zpad], axis=1)        # (Cin, pad + H*W + pad)

    # 9-tap depthwise conv: 9 static lane-shifted slices + VPU FMAs, all on
    # full H*W-wide lanes.  Boundary handling is free (folded into weights).
    acc = jnp.zeros((cin, hw), jnp.float32)
    for di in range(3):
        for dj in range(3):
            shift = (di - 1) * width + (dj - 1)
            tap = xp[:, pad + shift: pad + shift + hw]   # (Cin, H*W)
            acc = acc + tap * wmask_ref[3 * di + dj]

    # Channel mix (1x1 conv + BN2 scale): dense (Cout, Cin) @ (Cin, H*W).
    if use_mxu:
        # Production channel counts: one dense MXU matmul (bf16 operands on
        # v6e/v7x when requested, f32 accumulation).
        z = jnp.dot(w11_ref[...].astype(mxu_dtype), acc.astype(mxu_dtype),
                    preferred_element_type=jnp.float32)
    else:
        # Tiny demo channel counts: Cin broadcast-FMAs on the VPU beat waking
        # the (mostly idle) MXU for an (8, 4) x (4, 256) contraction.
        z = jnp.zeros((cout, hw), jnp.float32)
        for c in range(cin):
            z = z + w11_ref[:, c:c + 1] * acc[c:c + 1, :]

    z = jnp.maximum(z + bias_ref[...], 0.0)
    out_ref[...] = z.astype(out_ref.dtype)


def dilated_conv_forward(x_nchw, params, *, use_bf16_matmul=False):
    """Forward pass matching the PyTorch module (inference-mode BatchNorm).

    x_nchw: (N, Cin, H, W) float32 (PyTorch layout, returned unchanged).
    params: dict of PyTorch-shaped parameters (see make_params).
    returns: (N, Cout, H, W) float32.
    """
    N, Cin, H, W = x_nchw.shape
    Cout = params["w_1x1"].shape[0]
    HW = H * W
    pad = ((W + 1 + 127) // 128) * 128        # lane-aligned in-kernel halo >= W+1

    # --- fold both BatchNorms into the conv weights / a single bias ----------
    # (In a real deployment this folding runs once at weight-load time.)
    s1 = params["bn1_gamma"] / jnp.sqrt(params["bn1_var"] + EPS)               # (Cin,)
    b1 = s1 * (params["b_dw"] - params["bn1_mean"]) + params["bn1_beta"]       # (Cin,)
    w11 = params["w_1x1"][:, :, 0, 0]                                          # (Cout, Cin)
    s2 = params["bn2_gamma"] / jnp.sqrt(params["bn2_var"] + EPS)               # (Cout,)
    bias = s2 * (params["b_1x1"] + w11 @ b1 - params["bn2_mean"]) \
        + params["bn2_beta"]                                                   # (Cout,)
    w11_f = (w11 * s2[:, None]).astype(jnp.float32)                            # (Cout, Cin)
    wdw_f = params["w_dw"][:, 0, :, :] * s1[:, None, None]                     # (Cin, 3, 3)

    # Per-tap weights with the 3x3 'same'-padding boundary masks folded in:
    #   wmask[3*di+dj, c, i*W+j] = wdw_f[c,di,dj] if (i+di-1, j+dj-1) is inside
    #   the image, else 0.
    # This removes both the wrapper-side jnp.pad and any in-kernel branching.
    lane = jnp.arange(HW, dtype=jnp.int32)
    ii, jj = lane // W, lane % W
    taps = []
    for di in range(3):
        for dj in range(3):
            inside = ((ii + (di - 1) >= 0) & (ii + (di - 1) < H) &
                      (jj + (dj - 1) >= 0) & (jj + (dj - 1) < W))
            taps.append(wdw_f[:, di, dj][:, None] *
                        inside[None, :].astype(jnp.float32))
    wmask = jnp.stack(taps, axis=0).astype(jnp.float32)                        # (9, Cin, HW)

    # NCHW stays NCHW: (N, C, H, W) <-> (N, C, H*W) are free reshapes, so the
    # kernel boundary adds no HBM traffic beyond the tensors themselves.
    x_flat = x_nchw.reshape(N, Cin, HW)

    # Tiny Cin/Cout (demo): channel mix on the VPU.  Real UNet16 layers
    # (Cin/Cout >= 16) use the dense MXU matmul, bf16 operands if requested
    # (relax validation tolerance to ~1e-2 when enabling bf16).
    use_mxu = min(Cin, Cout) >= 16
    mxu_dtype = jnp.bfloat16 if use_bf16_matmul else jnp.float32

    # Explicit VMEM budget (double-buffered I/O blocks + resident weights +
    # in-kernel temporaries) with generous headroom; tiny at demo shapes.
    # TODO(synk): for production UNet16 shapes (e.g. 256x256x64) tile the H*W
    # lane axis (with a W-row halo) and Cout so per-step VMEM stays bounded on
    # v7x's 64 MiB, instead of one full image per step.
    blk_bytes = 4 * (2 * Cin * HW + 2 * Cout * HW + 9 * Cin * HW
                     + Cout * Cin + Cout
                     + Cin * (HW + 2 * pad) + 2 * (Cin + Cout) * HW)
    vmem_limit = int(min(max(8 * blk_bytes, 4 * 1024 * 1024), 32 * 1024 * 1024))

    kernel = functools.partial(_dilated_conv_kernel, width=W, pad=pad,
                               use_mxu=use_mxu, mxu_dtype=mxu_dtype)

    out_flat = pl.pallas_call(
        kernel,
        out_shape=jax.ShapeDtypeStruct((N, Cout, HW), jnp.float32),
        grid_spec=pltpu.PrefetchScalarGridSpec(
            num_scalar_prefetch=0,
            grid=(N,),                       # one step per image: 1-2 steps total
            in_specs=[
                pl.BlockSpec((None, Cin, HW), lambda n: (n, 0, 0)),
                # Constant block index -> weights stay resident (no re-DMA).
                pl.BlockSpec((9, Cin, HW), lambda n: (0, 0, 0)),
                pl.BlockSpec((Cout, Cin), lambda n: (0, 0)),
                pl.BlockSpec((Cout, 1), lambda n: (0, 0)),
            ],
            out_specs=pl.BlockSpec((None, Cout, HW), lambda n: (n, 0, 0)),
        ),
        compiler_params=pltpu.CompilerParams(
            dimension_semantics=("parallel",),   # batch sharded across TCs on v7x
            vmem_limit_bytes=vmem_limit),
    )(x_flat, wmask, w11_f, bias.reshape(Cout, 1).astype(jnp.float32))

    return out_flat.reshape(N, Cout, H, W)       # free reshape back to NCHW


def make_params(key, c_in, c_out):
    """Deterministic synthetic parameters with PyTorch layouts/shapes."""
    ks = jax.random.split(key, 10)
    return {
        "w_dw": jax.random.normal(ks[0], (c_in, 1, 3, 3), jnp.float32) * 0.3,
        "b_dw": jax.random.normal(ks[1], (c_in,), jnp.float32) * 0.1,
        "bn1_gamma": 1.0 + 0.1 * jax.random.normal(ks[2], (c_in,), jnp.float32),
        "bn1_beta": 0.1 * jax.random.normal(ks[3], (c_in,), jnp.float32),
        "bn1_mean": 0.05 * jax.random.normal(ks[4], (c_in,), jnp.float32),
        "bn1_var": jnp.abs(1.0 + 0.1 * jax.random.normal(ks[5], (c_in,), jnp.float32)),
        "w_1x1": jax.random.normal(ks[6], (c_out, c_in, 1, 1), jnp.float32) * 0.3,
        "b_1x1": jax.random.normal(ks[7], (c_out,), jnp.float32) * 0.1,
        "bn2_gamma": 1.0 + 0.1 * jax.random.normal(ks[8], (c_out,), jnp.float32),
        "bn2_beta": 0.1 * jax.random.normal(ks[9], (c_out,), jnp.float32),
        "bn2_mean": jnp.zeros((c_out,), jnp.float32),
        "bn2_var": jnp.ones((c_out,), jnp.float32),
    }


def reference_forward(x_nchw, p):
    """Pure-JAX reference (lax convs + unfolded BN) for validation."""
    y = jax.lax.conv_general_dilated(
        x_nchw, p["w_dw"], window_strides=(1, 1), padding="SAME",
        feature_group_count=x_nchw.shape[1],
        dimension_numbers=("NCHW", "OIHW", "NCHW"))
    y = y + p["b_dw"][None, :, None, None]
    y = p["bn1_gamma"][None, :, None, None] * (
        y - p["bn1_mean"][None, :, None, None]) / jnp.sqrt(
        p["bn1_var"][None, :, None, None] + EPS) + p["bn1_beta"][None, :, None, None]
    z = jax.lax.conv_general_dilated(
        y, p["w_1x1"], window_strides=(1, 1), padding="VALID",
        dimension_numbers=("NCHW", "OIHW", "NCHW"))
    z = z + p["b_1x1"][None, :, None, None]
    z = p["bn2_gamma"][None, :, None, None] * (
        z - p["bn2_mean"][None, :, None, None]) / jnp.sqrt(
        p["bn2_var"][None, :, None, None] + EPS) + p["bn2_beta"][None, :, None, None]
    return jnp.maximum(z, 0.0)


if __name__ == "__main__":
    key = jax.random.PRNGKey(0)
    kx, kp = jax.random.split(key)

    N, C_IN, C_OUT, H, W = 2, 4, 8, 16, 16
    x = jax.random.normal(kx, (N, C_IN, H, W), jnp.float32)
    params = make_params(kp, C_IN, C_OUT)

    out = jax.block_until_ready(dilated_conv_forward(x, params))
    ref = jax.block_until_ready(reference_forward(x, params))

    assert out.shape == (N, C_OUT, H, W)
    err = float(jnp.max(jnp.abs(out - ref)))
    assert err < 1e-4, f"mismatch vs reference: {err}"

    print("KERNEL_OK")
</pallas_src>

<mosaic_0001>
module attributes {stable_mosaic.version = 11 : i64} {
  func.func @_dilated_conv_kernel(%arg0: i32, %arg1: memref<1x4x256xf32, #tpu.memory_space<vmem>>, %arg2: memref<9x4x256xf32, #tpu.memory_space<vmem>>, %arg3: memref<8x4xf32, #tpu.memory_space<vmem>>, %arg4: memref<8x1xf32, #tpu.memory_space<vmem>>, %arg5: memref<1x8x256xf32, #tpu.memory_space<vmem>>) attributes {dimension_semantics = [#tpu.dimension_semantics<parallel>], iteration_bounds = array<i64: 2>, scalar_prefetch = 0 : i64, scratch_operands = 0 : i64, tpu.core_type = #tpu.core_type<tc>, window_params = [{transform_indices = @transform_0, window_bounds = array<i64: 1, 4, 256>}, {pipeline_mode = #tpu.pipeline_mode<synchronous>, transform_indices = @transform_1, window_bounds = array<i64: 9, 4, 256>}, {pipeline_mode = #tpu.pipeline_mode<synchronous>, transform_indices = @transform_2, window_bounds = array<i64: 8, 4>}, {pipeline_mode = #tpu.pipeline_mode<synchronous>, transform_indices = @transform_3, window_bounds = array<i64: 8, 1>}, {transform_indices = @transform_4, window_bounds = array<i64: 1, 8, 256>}]} {
    %c0 = arith.constant 0 : index
    %c0_0 = arith.constant 0 : index
    %c0_1 = arith.constant 0 : index
    %0 = vector.load %arg1[%c0, %c0_0, %c0_1] : memref<1x4x256xf32, #tpu.memory_space<vmem>>, vector<1x4x256xf32>
    %1 = vector.shape_cast %0 : vector<1x4x256xf32> to vector<4x256xf32>
    %cst = arith.constant 0.000000e+00 : f32
    %2 = vector.broadcast %cst : f32 to vector<4x128xf32>
    %3 = tpu.concatenate %2, %1, %2 in 1 : vector<4x128xf32>, vector<4x256xf32>, vector<4x128xf32> -> vector<4x512xf32>
    %cst_2 = arith.constant 0.000000e+00 : f32
    %4 = vector.broadcast %cst_2 : f32 to vector<4x256xf32>
    %5 = vector.extract_strided_slice %3 {offsets = [0, 111], sizes = [4, 256], strides = [1, 1]} : vector<4x512xf32> to vector<4x256xf32>
    %c0_3 = arith.constant 0 : index
    %c0_4 = arith.constant 0 : index
    %c0_5 = arith.constant 0 : index
    %6 = vector.load %arg2[%c0_3, %c0_4, %c0_5] : memref<9x4x256xf32, #tpu.memory_space<vmem>>, vector<1x4x256xf32>
    %7 = vector.shape_cast %6 : vector<1x4x256xf32> to vector<4x256xf32>
    %8 = arith.mulf %5, %7 : vector<4x256xf32>
    %9 = arith.addf %4, %8 : vector<4x256xf32>
    %10 = vector.extract_strided_slice %3 {offsets = [0, 112], sizes = [4, 256], strides = [1, 1]} : vector<4x512xf32> to vector<4x256xf32>
    %c1 = arith.constant 1 : index
    %c0_6 = arith.constant 0 : index
    %c0_7 = arith.constant 0 : index
    %11 = vector.load %arg2[%c1, %c0_6, %c0_7] : memref<9x4x256xf32, #tpu.memory_space<vmem>>, vector<1x4x256xf32>
    %12 = vector.shape_cast %11 : vector<1x4x256xf32> to vector<4x256xf32>
    %13 = arith.mulf %10, %12 : vector<4x256xf32>
    %14 = arith.addf %9, %13 : vector<4x256xf32>
    %15 = vector.extract_strided_slice %3 {offsets = [0, 113], sizes = [4, 256], strides = [1, 1]} : vector<4x512xf32> to vector<4x256xf32>
    %c2 = arith.constant 2 : index
    %c0_8 = arith.constant 0 : index
    %c0_9 = arith.constant 0 : index
    %16 = vector.load %arg2[%c2, %c0_8, %c0_9] : memref<9x4x256xf32, #tpu.memory_space<vmem>>, vector<1x4x256xf32>
    %17 = vector.shape_cast %16 : vector<1x4x256xf32> to vector<4x256xf32>
    %18 = arith.mulf %15, %17 : vector<4x256xf32>
    %19 = arith.addf %14, %18 : vector<4x256xf32>
    %20 = vector.extract_strided_slice %3 {offsets = [0, 127], sizes = [4, 256], strides = [1, 1]} : vector<4x512xf32> to vector<4x256xf32>
    %c3 = arith.constant 3 : index
    %c0_10 = arith.constant 0 : index
    %c0_11 = arith.constant 0 : index
    %21 = vector.load %arg2[%c3, %c0_10, %c0_11] : memref<9x4x256xf32, #tpu.memory_space<vmem>>, vector<1x4x256xf32>
    %22 = vector.shape_cast %21 : vector<1x4x256xf32> to vector<4x256xf32>
    %23 = arith.mulf %20, %22 : vector<4x256xf32>
    %24 = arith.addf %19, %23 : vector<4x256xf32>
    %25 = vector.extract_strided_slice %3 {offsets = [0, 128], sizes = [4, 256], strides = [1, 1]} : vector<4x512xf32> to vector<4x256xf32>
    %c4 = arith.constant 4 : index
    %c0_12 = arith.constant 0 : index
    %c0_13 = arith.constant 0 : index
    %26 = vector.load %arg2[%c4, %c0_12, %c0_13] : memref<9x4x256xf32, #tpu.memory_space<vmem>>, vector<1x4x256xf32>
    %27 = vector.shape_cast %26 : vector<1x4x256xf32> to vector<4x256xf32>
    %28 = arith.mulf %25, %27 : vector<4x256xf32>
    %29 = arith.addf %24, %28 : vector<4x256xf32>
    %30 = vector.extract_strided_slice %3 {offsets = [0, 129], sizes = [4, 256], strides = [1, 1]} : vector<4x512xf32> to vector<4x256xf32>
    %c5 = arith.constant 5 : index
    %c0_14 = arith.constant 0 : index
    %c0_15 = arith.constant 0 : index
    %31 = vector.load %arg2[%c5, %c0_14, %c0_15] : memref<9x4x256xf32, #tpu.memory_space<vmem>>, vector<1x4x256xf32>
    %32 = vector.shape_cast %31 : vector<1x4x256xf32> to vector<4x256xf32>
    %33 = arith.mulf %30, %32 : vector<4x256xf32>
    %34 = arith.addf %29, %33 : vector<4x256xf32>
    %35 = vector.extract_strided_slice %3 {offsets = [0, 143], sizes = [4, 256], strides = [1, 1]} : vector<4x512xf32> to vector<4x256xf32>
    %c6 = arith.constant 6 : index
    %c0_16 = arith.constant 0 : index
    %c0_17 = arith.constant 0 : index
    %36 = vector.load %arg2[%c6, %c0_16, %c0_17] : memref<9x4x256xf32, #tpu.memory_space<vmem>>, vector<1x4x256xf32>
    %37 = vector.shape_cast %36 : vector<1x4x256xf32> to vector<4x256xf32>
    %38 = arith.mulf %35, %37 : vector<4x256xf32>
    %39 = arith.addf %34, %38 : vector<4x256xf32>
    %40 = vector.extract_strided_slice %3 {offsets = [0, 144], sizes = [4, 256], strides = [1, 1]} : vector<4x512xf32> to vector<4x256xf32>
    %c7 = arith.constant 7 : index
    %c0_18 = arith.constant 0 : index
    %c0_19 = arith.constant 0 : index
    %41 = vector.load %arg2[%c7, %c0_18, %c0_19] : memref<9x4x256xf32, #tpu.memory_space<vmem>>, vector<1x4x256xf32>
    %42 = vector.shape_cast %41 : vector<1x4x256xf32> to vector<4x256xf32>
    %43 = arith.mulf %40, %42 : vector<4x256xf32>
    %44 = arith.addf %39, %43 : vector<4x256xf32>
    %45 = vector.extract_strided_slice %3 {offsets = [0, 145], sizes = [4, 256], strides = [1, 1]} : vector<4x512xf32> to vector<4x256xf32>
    %c8 = arith.constant 8 : index
    %c0_20 = arith.constant 0 : index
    %c0_21 = arith.constant 0 : index
    %46 = vector.load %arg2[%c8, %c0_20, %c0_21] : memref<9x4x256xf32, #tpu.memory_space<vmem>>, vector<1x4x256xf32>
    %47 = vector.shape_cast %46 : vector<1x4x256xf32> to vector<4x256xf32>
    %48 = arith.mulf %45, %47 : vector<4x256xf32>
    %49 = arith.addf %44, %48 : vector<4x256xf32>
    %cst_22 = arith.constant 0.000000e+00 : f32
    %50 = vector.broadcast %cst_22 : f32 to vector<8x256xf32>
    %c0_23 = arith.constant 0 : index
    %c0_24 = arith.constant 0 : index
    %51 = vector.load %arg3[%c0_23, %c0_24] : memref<8x4xf32, #tpu.memory_space<vmem>>, vector<8x1xf32>
    %52 = vector.extract_strided_slice %49 {offsets = [0, 0], sizes = [1, 256], strides = [1, 1]} : vector<4x256xf32> to vector<1x256xf32>
    %53 = vector.broadcast %51 : vector<8x1xf32> to vector<8x256xf32>
    %54 = vector.broadcast %52 : vector<1x256xf32> to vector<8x256xf32>
    %55 = arith.mulf %53, %54 : vector<8x256xf32>
    %56 = arith.addf %50, %55 : vector<8x256xf32>
    %c0_25 = arith.constant 0 : index
    %c1_26 = arith.constant 1 : index
    %57 = vector.load %arg3[%c0_25, %c1_26] : memref<8x4xf32, #tpu.memory_space<vmem>>, vector<8x1xf32>
    %58 = vector.extract_strided_slice %49 {offsets = [1, 0], sizes = [1, 256], strides = [1, 1]} : vector<4x256xf32> to vector<1x256xf32>
    %59 = vector.broadcast %57 : vector<8x1xf32> to vector<8x256xf32>
    %60 = vector.broadcast %58 : vector<1x256xf32> to vector<8x256xf32>
    %61 = arith.mulf %59, %60 : vector<8x256xf32>
    %62 = arith.addf %56, %61 : vector<8x256xf32>
    %c0_27 = arith.constant 0 : index
    %c2_28 = arith.constant 2 : index
    %63 = vector.load %arg3[%c0_27, %c2_28] : memref<8x4xf32, #tpu.memory_space<vmem>>, vector<8x1xf32>
    %64 = vector.extract_strided_slice %49 {offsets = [2, 0], sizes = [1, 256], strides = [1, 1]} : vector<4x256xf32> to vector<1x256xf32>
    %65 = vector.broadcast %63 : vector<8x1xf32> to vector<8x256xf32>
    %66 = vector.broadcast %64 : vector<1x256xf32> to vector<8x256xf32>
    %67 = arith.mulf %65, %66 : vector<8x256xf32>
    %68 = arith.addf %62, %67 : vector<8x256xf32>
    %c0_29 = arith.constant 0 : index
    %c3_30 = arith.constant 3 : index
    %69 = vector.load %arg3[%c0_29, %c3_30] : memref<8x4xf32, #tpu.memory_space<vmem>>, vector<8x1xf32>
    %70 = vector.extract_strided_slice %49 {offsets = [3, 0], sizes = [1, 256], strides = [1, 1]} : vector<4x256xf32> to vector<1x256xf32>
    %71 = vector.broadcast %69 : vector<8x1xf32> to vector<8x256xf32>
    %72 = vector.broadcast %70 : vector<1x256xf32> to vector<8x256xf32>
    %73 = arith.mulf %71, %72 : vector<8x256xf32>
    %74 = arith.addf %68, %73 : vector<8x256xf32>
    %c0_31 = arith.constant 0 : index
    %c0_32 = arith.constant 0 : index
    %75 = vector.load %arg4[%c0_31, %c0_32] : memref<8x1xf32, #tpu.memory_space<vmem>>, vector<8x1xf32>
    %76 = vector.broadcast %75 : vector<8x1xf32> to vector<8x256xf32>
    %77 = arith.addf %74, %76 : vector<8x256xf32>
    %cst_33 = arith.constant 0.000000e+00 : f32
    %78 = vector.broadcast %cst_33 : f32 to vector<8x256xf32>
    %79 = arith.maximumf %77, %78 : vector<8x256xf32>
    %c0_34 = arith.constant 0 : index
    %c0_35 = arith.constant 0 : index
    %c0_36 = arith.constant 0 : index
    %80 = vector.load %arg5[%c0_34, %c0_35, %c0_36] : memref<1x8x256xf32, #tpu.memory_space<vmem>>, vector<1x8x256xf32>
    %81 = vector.shape_cast %80 : vector<1x8x256xf32> to vector<8x256xf32>
    %82 = vector.shape_cast %79 : vector<8x256xf32> to vector<1x8x256xf32>
    tpu.vector_store %arg5[%c0_34, %c0_35, %c0_36], %82 {strides = array<i32>} : memref<1x8x256xf32, #tpu.memory_space<vmem>>, vector<1x8x256xf32>,
    return
  }
  func.func @transform_0(%arg0: i32) -> (i32, i32, i32) {
    %c0_i32 = arith.constant 0 : i32
    %c0_i32_0 = arith.constant 0 : i32
    %c0_i32_1 = arith.constant 0 : i32
    return %arg0, %c0_i32, %c0_i32_0 : i32, i32, i32
  }
  func.func @transform_1(%arg0: i32) -> (i32, i32, i32) {
    %c0_i32 = arith.constant 0 : i32
    %c0_i32_0 = arith.constant 0 : i32
    %c0_i32_1 = arith.constant 0 : i32
    %c0_i32_2 = arith.constant 0 : i32
    return %c0_i32, %c0_i32_0, %c0_i32_1 : i32, i32, i32
  }
  func.func @transform_2(%arg0: i32) -> (i32, i32) {
    %c0_i32 = arith.constant 0 : i32
    %c0_i32_0 = arith.constant 0 : i32
    %c0_i32_1 = arith.constant 0 : i32
    return %c0_i32, %c0_i32_0 : i32, i32
  }
  func.func @transform_3(%arg0: i32) -> (i32, i32) {
    %c0_i32 = arith.constant 0 : i32
    %c0_i32_0 = arith.constant 0 : i32
    %c0_i32_1 = arith.constant 0 : i32
    return %c0_i32, %c0_i32_0 : i32, i32
  }
  func.func @transform_4(%arg0: i32) -> (i32, i32, i32) {
    %c0_i32 = arith.constant 0 : i32
    %c0_i32_0 = arith.constant 0 : i32
    %c0_i32_1 = arith.constant 0 : i32
    return %arg0, %c0_i32, %c0_i32_0 : i32, i32, i32
  }
}

</mosaic_0001>

<llo_original>
// kernel: tpu_custom_call.1
$region0: #{tpu_custom_call.1}
  #allocation0 [shape = 'u32[]', space=smem, size = 0x4, offset = 0x4, fixed_abs, tag = 'smem constant byte address 0x4 - core index']
  #allocation1 [shape = 'u32[72,128]{1,0:T(1,128)}', space=vmem, size = 0x9000, scoped, tag = 'internal scratch']
  %s0 = inlined_call_operand.vmem [shape: f32[2,4,256], index: 0, kind: input, shape index: {}]
  %s1 = inlined_call_operand.hbm [shape: f32[9,4,256], index: 1, kind: input, shape index: {}]
  %s2 = inlined_call_operand.vmem [shape: f32[8,4], index: 2, kind: input, shape index: {}]
  %s3 = inlined_call_operand.vmem [shape: f32[8,1], index: 3, kind: input, shape index: {}]
  %s4 = inlined_call_operand.hbm [shape: f32[2,8,256], index: 4, kind: output, shape index: {}]
  %s5 = sld [smem:[#allocation0]]
  $region53: #{tpu_custom_call.1} parent=0
    _
  %s7 = ssub.s32 1, %s5
  %s8 = scalar_select 0, %s7, %s5
  $region1: #{tpu_custom_call.1} parent=0
    #allocation2 [shape = 'u8[36864]{0}', space=vmem, size = 0x9000, scoped, tag = 'input window, operand 1, single buffered']
    #allocation3 [shape = 's32[2]{0}', space=sflag, size = 0x8, scoped, tag = 'scoped memory for tpu_custom_call.1']
    #allocation4 [shape = 's32[2]{0}', space=sflag, size = 0x8, scoped, tag = 'scoped memory for tpu_custom_call.1']
    #allocation5 [shape = 'u8[16384]{0}', space=vmem, size = 0x4000, scoped, tag = 'output window, operand 0']
    %9 = vsyncpa [#allocation3], 0
    %10 = vsyncpa [#allocation4], 0
    %s11 = scalar_lea.sflag [#allocation4], 1
    %12 = vsyncpa %s11, 0
    loop: start=0, step=1, limit=4
    $region2: #{tpu_custom_call.1} parent=1 // loop_pre_header
      _
    $region3: #{tpu_custom_call.1} parent=1 // loop_header
      %s14 = sphi 0, %s18
      %p15 = scmp.ge.s32.totalorder %s14, 4
      %s24 = sphi 0, %s26
      %s27 = sphi 0, %s24
      %s28 = sphi 0, %s27
      %s44 = sphi 0, %s28
      %s48 = sphi 0, %s48
      %s50 = sphi 0, %s48
      %s51 = sphi 0, %s50
      %s65 = sphi 0, %s51
      %s69 = sphi 0, %s69
      %s71 = sphi 0, %s69
      %s72 = sphi 0, %s71
      %s86 = sphi 0, %s72
      %s90 = sphi 0, %s90
      %s92 = sphi 0, %s90
      %s93 = sphi 0, %s92
      %s107 = sphi 0, %s93
      %s113 = sphi 0, %s115
      %s116 = sphi 0, %s113
      %s117 = sphi 0, %s116
      %s133 = sphi 0, %s117
    $region4: #{tpu_custom_call.1} parent=1 // loop_header_branch
      %17 = sbr.rel (%p15) target = $region8
    $region5: #{tpu_custom_call.1} parent=1 // loop_body
      %s19 = ssub.s32 %s14, 1
      %s20 = ssub.s32 %s14, 2
      %s21 = sadd.s32 %s14, 1
      %s22 = ssub.s32 %s14, %s21
      %p23 = scmp.eq.s32.totalorder %s22, 0
      %s25 = sadd.s32 %s24, 1
      %s26 = scalar_select %p23, %s24, %s25
      %p29 = pneg %p23
      %p30 = scmp.eq.s32.totalorder %s14, 1
      %p31 = por %p29, %p30
      %p32 = scmp.ne.s32.totalorder %s24, %s27
      %p33 = scmp.eq.s32.totalorder %s14, 0
      %p34 = por %p32, %p33
      %p35 = scmp.ne.s32.totalorder %s24, %s27
      %p36 = scmp.eq.s32.totalorder %s19, 1
      %p37 = por %p35, %p36
      %p38 = scmp.ne.s32.totalorder %s27, %s28
      %p39 = scmp.eq.s32.totalorder %s19, 0
      %p40 = por %p38, %p39
      %p41 = scmp.ne.s32.totalorder %s27, %s28
      %p42 = scmp.eq.s32.totalorder %s20, 1
      %p43 = por %p41, %p42
      %p45 = scmp.ne.s32.totalorder %s28, %s44
      %p46 = scmp.eq.s32.totalorder %s20, 0
      %p47 = por %p45, %p46
      %s49 = sadd.s32 %s48, 1
      %p52 = scmp.eq.s32.totalorder %s14, 1
      %p53 = scmp.ne.s32.totalorder %s48, %s50
      %p54 = scmp.eq.s32.totalorder %s14, 0
      %p55 = por %p53, %p54
      %p56 = scmp.ne.s32.totalorder %s48, %s50
      %p57 = scmp.eq.s32.totalorder %s19, 1
      %p58 = por %p56, %p57
      %p59 = scmp.ne.s32.totalorder %s50, %s51
      %p60 = scmp.eq.s32.totalorder %s19, 0
      %p61 = por %p59, %p60
      %p62 = scmp.ne.s32.totalorder %s50, %s51
      %p63 = scmp.eq.s32.totalorder %s20, 1
      %p64 = por %p62, %p63
      %p66 = scmp.ne.s32.totalorder %s51, %s65
      %p67 = scmp.eq.s32.totalorder %s20, 0
      %p68 = por %p66, %p67
      %s70 = sadd.s32 %s69, 1
      %p73 = scmp.eq.s32.totalorder %s14, 1
      %p74 = scmp.ne.s32.totalorder %s69, %s71
      %p75 = scmp.eq.s32.totalorder %s14, 0
      %p76 = por %p74, %p75
      %p77 = scmp.ne.s32.totalorder %s69, %s71
      %p78 = scmp.eq.s32.totalorder %s19, 1
      %p79 = por %p77, %p78
      %p80 = scmp.ne.s32.totalorder %s71, %s72
      %p81 = scmp.eq.s32.totalorder %s19, 0
      %p82 = por %p80, %p81
      %p83 = scmp.ne.s32.totalorder %s71, %s72
      %p84 = scmp.eq.s32.totalorder %s20, 1
      %p85 = por %p83, %p84
      %p87 = scmp.ne.s32.totalorder %s72, %s86
      %p88 = scmp.eq.s32.totalorder %s20, 0
      %p89 = por %p87, %p88
      %s91 = sadd.s32 %s90, 1
      %p94 = scmp.eq.s32.totalorder %s14, 1
      %p95 = scmp.ne.s32.totalorder %s90, %s92
      %p96 = scmp.eq.s32.totalorder %s14, 0
      %p97 = por %p95, %p96
      %p98 = scmp.ne.s32.totalorder %s90, %s92
      %p99 = scmp.eq.s32.totalorder %s19, 1
      %p100 = por %p98, %p99
      %p101 = scmp.ne.s32.totalorder %s92, %s93
      %p102 = scmp.eq.s32.totalorder %s19, 0
      %p103 = por %p101, %p102
      %p104 = scmp.ne.s32.totalorder %s92, %s93
      %p105 = scmp.eq.s32.totalorder %s20, 1
      %p106 = por %p104, %p105
      %p108 = scmp.ne.s32.totalorder %s93, %s107
      %p109 = scmp.eq.s32.totalorder %s20, 0
      %p110 = por %p108, %p109
      %s111 = ssub.s32 %s14, %s21
      %p112 = scmp.eq.s32.totalorder %s111, 0
      %s114 = sadd.s32 %s113, 1
      %s115 = scalar_select %p112, %s113, %s114
      %p118 = pneg %p112
      %p119 = scmp.eq.s32.totalorder %s14, 1
      %p120 = por %p118, %p119
      %p121 = scmp.ne.s32.totalorder %s113, %s116
      %p122 = scmp.eq.s32.totalorder %s14, 0
      %p123 = por %p121, %p122
      %p124 = scmp.ne.s32.totalorder %s113, %s116
      %p125 = scmp.eq.s32.totalorder %s19, 1
      %p126 = por %p124, %p125
      %p127 = scmp.ne.s32.totalorder %s116, %s117
      %p128 = scmp.eq.s32.totalorder %s19, 0
      %p129 = por %p127, %p128
      %p130 = scmp.ne.s32.totalorder %s116, %s117
      %p131 = scmp.eq.s32.totalorder %s20, 1
      %p132 = por %p130, %p131
      %p134 = scmp.ne.s32.totalorder %s117, %s133
      %p135 = scmp.eq.s32.totalorder %s20, 0
      %p136 = por %p134, %p135
      %p137 = scmp.le.s32.totalorder 1, %s14
      %p138 = scmp.lt.s32.totalorder %s14, 3
      %p139 = pnand %p137, %p138
      %p140 = pneg %p139
      // Predicated region
      $region9: #{tpu_custom_call.1} parent=5 // pred_check
        _
      $region10: #{tpu_custom_call.1} parent=5 // pred_check_branch
        %142 = sbr.rel (%p139) target = $region12
      $region11: #{tpu_custom_call.1} parent=5 // pred_region
        %s143 = ssub.s32 %s14, 1
        // Predicated region
        $region13: #{tpu_custom_call.1} parent=11 // pred_check
          %p144 = pneg %p61
        $region14: #{tpu_custom_call.1} parent=11 // pred_check_branch
          %146 = sbr.rel (%p144) target = $region16
        $region15: #{tpu_custom_call.1} parent=11 // pred_region
          %148 = vsyncadd [#allocation3], 0
          %s149 = sshll.u32 %s1, 4
          %s150 = int_to_ptr.hbm [resolvable:$true] %s149
          %s151 = sshll.u32 [#allocation2], 4
          %s152 = int_to_ptr.vmem [resolvable:$true] %s151
          %157 = dma.hbm_to_vmem [thread:$0]  %s150, 1152, %s152, [#allocation3], 128, 128, 8
        $region16: #{tpu_custom_call.1} parent=11 // pred_fallthru
          _
        // Predicated region
        $region17: #{tpu_custom_call.1} parent=11 // pred_check
          %p158 = pneg %p82
        $region18: #{tpu_custom_call.1} parent=11 // pred_check_branch
          %160 = sbr.rel (%p158) target = $region20
        $region19: #{tpu_custom_call.1} parent=11 // pred_region
          _
        $region20: #{tpu_custom_call.1} parent=11 // pred_fallthru
          _
        // Predicated region
        $region21: #{tpu_custom_call.1} parent=11 // pred_check
          %p161 = pneg %p103
        $region22: #{tpu_custom_call.1} parent=11 // pred_check_branch
          %163 = sbr.rel (%p161) target = $region24
        $region23: #{tpu_custom_call.1} parent=11 // pred_region
          _
        $region24: #{tpu_custom_call.1} parent=11 // pred_fallthru
          _
      $region12: #{tpu_custom_call.1} parent=5 // pred_fallthru
        _
      %p164 = scmp.lt.s32.totalorder %s14, 2
      // Predicated region
      $region25: #{tpu_custom_call.1} parent=5 // pred_check
        %p165 = pneg %p164
      $region26: #{tpu_custom_call.1} parent=5 // pred_check_branch
        %167 = sbr.rel (%p165) target = $region28
      $region27: #{tpu_custom_call.1} parent=5 // pred_region
        // Predicated region
        $region29: #{tpu_custom_call.1} parent=27 // pred_check
          %p168 = pneg %p34
        $region30: #{tpu_custom_call.1} parent=27 // pred_check_branch
          %170 = sbr.rel (%p168) target = $region32
        $region31: #{tpu_custom_call.1} parent=27 // pred_region
          %p171 = scmp.lt.s32.totalorder %s14, 1
          %s172 = scalar_select %p171, %s14, 1
          %s173 = smul.addr %s172, 2
          %s174 = smul.addr %s173, 4
          %s175 = scalar_lea.vmem %s0, %s174
        $region32: #{tpu_custom_call.1} parent=27 // pred_fallthru
          _
      $region28: #{tpu_custom_call.1} parent=5 // pred_fallthru
        _
      %p176 = scmp.le.s32.totalorder 1, %s14
      %p177 = scmp.lt.s32.totalorder %s14, 3
      %p178 = pnand %p176, %p177
      %p179 = pneg %p178
      // Predicated region
      $region33: #{tpu_custom_call.1} parent=5 // pred_check
        _
      $region34: #{tpu_custom_call.1} parent=5 // pred_check_branch
        %181 = sbr.rel (%p178) target = $region36
      $region35: #{tpu_custom_call.1} parent=5 // pred_region
        %s182 = ssub.s32 %s14, 1
        // Predicated region
        $region37: #{tpu_custom_call.1} parent=35 // pred_check
          %p183 = pneg %p61
        $region38: #{tpu_custom_call.1} parent=35 // pred_check_branch
          %185 = sbr.rel (%p183) target = $region40
        $region39: #{tpu_custom_call.1} parent=35 // pred_region
          %187 = dma.done [#allocation3], 1152
        $region40: #{tpu_custom_call.1} parent=35 // pred_fallthru
          _
        %p188 = scmp.lt.s32.totalorder %s19, 1
        %s189 = scalar_select %p188, %s19, 1
        %s190 = smul.addr %s189, 2
        %s191 = smul.addr %s190, 4
        %s192 = scalar_lea.vmem %s0, %s191
        %p193 = pneg %p40
        %p194 = pneg %p37
        %p195 = pneg %p61
        %p196 = pneg %p58
        %p197 = pneg %p82
        %p198 = pneg %p79
        %p199 = pneg %p103
        %p200 = pneg %p100
        %p201 = pneg %p129
        %p202 = pneg %p126
        %s203 = sand.u32 %s116, 1
        %s204 = scalar_lea.sflag [#allocation4], %s203
        %s205 = sand.u32 %s116, 1
        %s206 = smul.addr %s205, 16
        %s207 = scalar_lea.vmem [#allocation5], %s206
        %p208 = scmp.lt.s32.totalorder %s19, 1
        %s209 = scalar_select %p208, %s19, 1
        %s210 = smul.addr %s209, 2
        %s211 = smul.addr %s210, 4
        %s212 = scalar_lea.vmem %s0, %s211
        %v213 = vld [vmem:[%s212] sm:$0xff]
        %215 = vst [vmem:[#allocation1] ss:$2 sm:$0xff] %v213
        %v216 = vld.sshfl [vmem:[#allocation1] sm:$0xff pattern:$0x75316420]
        %v217 = vld.sshfl [vmem:[#allocation1 + $0x8] sm:$0xff pattern:$0x75316420]
        %v220 = vld [vmem:[#allocation2] sm:$0xff]
        %222 = vst [vmem:[#allocation1] ss:$2 sm:$0xff] %v220
        %v223 = vld.sshfl [vmem:[#allocation1] sm:$0xff pattern:$0x75316420]
        %v224 = vld.sshfl [vmem:[#allocation1 + $0x8] sm:$0xff pattern:$0x75316420]
        %225 = vrot.lane.b32.xlu0 %v223, 111
        %v226 = vpop.permute.xlu0 %225
        %227 = vrot.lane.b32.xlu0 %v224, 111
        %v228 = vpop.permute.xlu0 %227
        %vm229 = vcmask 908288
        %v230 = vsel %vm229, %v226, %v228
        %v234 = vmul.f32 %v226, 0.0
        %v235 = vmul.f32 %v216, %v230
        %v236 = vmul.f32 %v217, %v228
        %v237 = vadd.f32 %v234, 0.0
        %v238 = vadd.f32 %v235, 0.0
        %v239 = vadd.f32 %v236, 0.0
        %s240 = scalar_lea.vmem [#allocation2], 8
        %v241 = vld [vmem:[%s240] sm:$0xff]
        %243 = vst [vmem:[#allocation1] ss:$2 sm:$0xff] %v241
        %v244 = vld.sshfl [vmem:[#allocation1] sm:$0xff pattern:$0x75316420]
        %v245 = vld.sshfl [vmem:[#allocation1 + $0x8] sm:$0xff pattern:$0x75316420]
        %246 = vrot.lane.b32.xlu0 %v244, 112
        %v247 = vpop.permute.xlu0 %246
        %248 = vrot.lane.b32.xlu0 %v245, 112
        %v249 = vpop.permute.xlu0 %248
        %vm250 = vcmask 916480
        %v251 = vsel %vm250, %v247, %v249
        %v255 = vmul.f32 %v247, 0.0
        %v256 = vmul.f32 %v216, %v251
        %v257 = vmul.f32 %v217, %v249
        %261 = vrot.lane.b32.xlu0 %v255, 127
        %v262 = vpop.permute.xlu0 %261
        %263 = vrot.lane.b32.xlu0 %v256, 127
        %v264 = vpop.permute.xlu0 %263
        %265 = vrot.lane.b32.xlu0 %v257, 127
        %v266 = vpop.permute.xlu0 %265
        %vm267 = vcmask 1039360
        %v268 = vsel %vm267, %v262, %v264
        %v269 = vsel %vm267, %v264, %v266
        %v273 = vadd.f32 %v237, %v268
        %v274 = vadd.f32 %v238, %v269
        %v275 = vadd.f32 %v239, %v266
        %s276 = scalar_lea.vmem [#allocation2], 16
        %v277 = vld [vmem:[%s276] sm:$0xff]
        %279 = vst [vmem:[#allocation1] ss:$2 sm:$0xff] %v277
        %v280 = vld.sshfl [vmem:[#allocation1] sm:$0xff pattern:$0x75316420]
        %v281 = vld.sshfl [vmem:[#allocation1 + $0x8] sm:$0xff pattern:$0x75316420]
        %282 = vrot.lane.b32.xlu0 %v280, 113
        %v283 = vpop.permute.xlu0 %282
        %284 = vrot.lane.b32.xlu0 %v281, 113
        %v285 = vpop.permute.xlu0 %284
        %vm286 = vcmask 924672
        %v287 = vsel %vm286, %v283, %v285
        %v291 = vmul.f32 %v283, 0.0
        %v292 = vmul.f32 %v216, %v287
        %v293 = vmul.f32 %v217, %v285
        %297 = vrot.lane.b32.xlu0 %v291, 126
        %v298 = vpop.permute.xlu0 %297
        %299 = vrot.lane.b32.xlu0 %v292, 126
        %v300 = vpop.permute.xlu0 %299
        %301 = vrot.lane.b32.xlu0 %v293, 126
        %v302 = vpop.permute.xlu0 %301
        %vm303 = vcmask 1031168
        %v304 = vsel %vm303, %v298, %v300
        %v305 = vsel %vm303, %v300, %v302
        %v309 = vadd.f32 %v273, %v304
        %v310 = vadd.f32 %v274, %v305
        %v311 = vadd.f32 %v275, %v302
        %s312 = scalar_lea.vmem [#allocation2], 24
        %v313 = vld [vmem:[%s312] sm:$0xff]
        %315 = vst [vmem:[#allocation1] ss:$2 sm:$0xff] %v313
        %v316 = vld.sshfl [vmem:[#allocation1] sm:$0xff pattern:$0x75316420]
        %v317 = vld.sshfl [vmem:[#allocation1 + $0x8] sm:$0xff pattern:$0x75316420]
        %318 = vrot.lane.b32.xlu0 %v316, 127
        %v319 = vpop.permute.xlu0 %318
        %320 = vrot.lane.b32.xlu0 %v317, 127
        %v321 = vpop.permute.xlu0 %320
        %v322 = vsel %vm267, %v319, %v321
        %v326 = vmul.f32 %v319, 0.0
        %v327 = vmul.f32 %v216, %v322
        %v328 = vmul.f32 %v217, %v321
        %332 = vrot.lane.b32.xlu0 %v326, 112
        %v333 = vpop.permute.xlu0 %332
        %334 = vrot.lane.b32.xlu0 %v327, 112
        %v335 = vpop.permute.xlu0 %334
        %336 = vrot.lane.b32.xlu0 %v328, 112
        %v337 = vpop.permute.xlu0 %336
        %v338 = vsel %vm250, %v333, %v335
        %v339 = vsel %vm250, %v335, %v337
        %v343 = vadd.f32 %v309, %v338
        %v344 = vadd.f32 %v310, %v339
        %v345 = vadd.f32 %v311, %v337
        %s346 = scalar_lea.vmem [#allocation2], 32
        %v347 = vld [vmem:[%s346] sm:$0xff]
        %349 = vst [vmem:[#allocation1] ss:$2 sm:$0xff] %v347
        %v350 = vld.sshfl [vmem:[#allocation1] sm:$0xff pattern:$0x75316420]
        %v351 = vld.sshfl [vmem:[#allocation1 + $0x8] sm:$0xff pattern:$0x75316420]
        %v354 = vmul.f32 %v216, %v350
        %v355 = vmul.f32 %v217, %v351
        %358 = vrot.lane.b32.xlu0 %v354, 111
        %v359 = vpop.permute.xlu0 %358
        %360 = vrot.lane.b32.xlu0 %v355, 111
        %v361 = vpop.permute.xlu0 %360
        %v362 = vsel %vm229, %v359, %v361
        %v366 = vadd.f32 %v343, %v359
        %v367 = vadd.f32 %v344, %v362
        %v368 = vadd.f32 %v345, %v361
        %s369 = scalar_lea.vmem [#allocation2], 40
        %v370 = vld [vmem:[%s369] sm:$0xff]
        %372 = vst [vmem:[#allocation1] ss:$2 sm:$0xff] %v370
        %v373 = vld.sshfl [vmem:[#allocation1] sm:$0xff pattern:$0x75316420]
        %v374 = vld.sshfl [vmem:[#allocation1 + $0x8] sm:$0xff pattern:$0x75316420]
        %375 = vrot.lane.b32.xlu0 %v373, 1
        %v376 = vpop.permute.xlu0 %375
        %377 = vrot.lane.b32.xlu0 %v374, 1
        %v378 = vpop.permute.xlu0 %377
        %vm379 = vcmask 7168
        %v380 = vsel %vm379, %v376, %v378
        %v384 = vmul.f32 %v216, %v376
        %v385 = vmul.f32 %v217, %v380
        %v386 = vmul.f32 %v378, 0.0
        %390 = vrot.lane.b32.xlu0 %v384, 110
        %v391 = vpop.permute.xlu0 %390
        %392 = vrot.lane.b32.xlu0 %v385, 110
        %v393 = vpop.permute.xlu0 %392
        %394 = vrot.lane.b32.xlu0 %v386, 110
        %v395 = vpop.permute.xlu0 %394
        %vm396 = vcmask 900096
        %v397 = vsel %vm396, %v391, %v393
        %v398 = vsel %vm396, %v393, %v395
        %v402 = vadd.f32 %v366, %v391
        %v403 = vadd.f32 %v367, %v397
        %v404 = vadd.f32 %v368, %v398
        %s405 = scalar_lea.vmem [#allocation2], 48
        %v406 = vld [vmem:[%s405] sm:$0xff]
        %408 = vst [vmem:[#allocation1] ss:$2 sm:$0xff] %v406
        %v409 = vld.sshfl [vmem:[#allocation1] sm:$0xff pattern:$0x75316420]
        %v410 = vld.sshfl [vmem:[#allocation1 + $0x8] sm:$0xff pattern:$0x75316420]
        %411 = vrot.lane.b32.xlu0 %v409, 15
        %v412 = vpop.permute.xlu0 %411
        %413 = vrot.lane.b32.xlu0 %v410, 15
        %v414 = vpop.permute.xlu0 %413
        %vm415 = vcmask 121856
        %v416 = vsel %vm415, %v412, %v414
        %v420 = vmul.f32 %v216, %v412
        %v421 = vmul.f32 %v217, %v416
        %v422 = vmul.f32 %v414, 0.0
        %426 = vrot.lane.b32.xlu0 %v420, 96
        %v427 = vpop.permute.xlu0 %426
        %428 = vrot.lane.b32.xlu0 %v421, 96
        %v429 = vpop.permute.xlu0 %428
        %430 = vrot.lane.b32.xlu0 %v422, 96
        %v431 = vpop.permute.xlu0 %430
        %vm432 = vcmask 785408
        %v433 = vsel %vm432, %v427, %v429
        %v434 = vsel %vm432, %v429, %v431
        %v438 = vadd.f32 %v402, %v427
        %v439 = vadd.f32 %v403, %v433
        %v440 = vadd.f32 %v404, %v434
        %s441 = scalar_lea.vmem [#allocation2], 56
        %v442 = vld [vmem:[%s441] sm:$0xff]
        %444 = vst [vmem:[#allocation1] ss:$2 sm:$0xff] %v442
        %v445 = vld.sshfl [vmem:[#allocation1] sm:$0xff pattern:$0x75316420]
        %v446 = vld.sshfl [vmem:[#allocation1 + $0x8] sm:$0xff pattern:$0x75316420]
        %447 = vrot.lane.b32.xlu0 %v445, 16
        %v448 = vpop.permute.xlu0 %447
        %449 = vrot.lane.b32.xlu0 %v446, 16
        %v450 = vpop.permute.xlu0 %449
        %vm451 = vcmask 130048
        %v452 = vsel %vm451, %v448, %v450
        %v456 = vmul.f32 %v216, %v448
        %v457 = vmul.f32 %v217, %v452
        %v458 = vmul.f32 %v450, 0.0
        %462 = vrot.lane.b32.xlu0 %v456, 95
        %v463 = vpop.permute.xlu0 %462
        %464 = vrot.lane.b32.xlu0 %v457, 95
        %v465 = vpop.permute.xlu0 %464
        %466 = vrot.lane.b32.xlu0 %v458, 95
        %v467 = vpop.permute.xlu0 %466
        %vm468 = vcmask 777216
        %v469 = vsel %vm468, %v463, %v465
        %v470 = vsel %vm468, %v465, %v467
        %v474 = vadd.f32 %v438, %v463
        %v475 = vadd.f32 %v439, %v469
        %v476 = vadd.f32 %v440, %v470
        %s477 = scalar_lea.vmem [#allocation2], 64
        %v478 = vld [vmem:[%s477] sm:$0xff]
        %480 = vst [vmem:[#allocation1] ss:$2 sm:$0xff] %v478
        %v481 = vld.sshfl [vmem:[#allocation1] sm:$0xff pattern:$0x75316420]
        %v482 = vld.sshfl [vmem:[#allocation1 + $0x8] sm:$0xff pattern:$0x75316420]
        %483 = vrot.lane.b32.xlu0 %v481, 17
        %v484 = vpop.permute.xlu0 %483
        %485 = vrot.lane.b32.xlu0 %v482, 17
        %v486 = vpop.permute.xlu0 %485
        %vm487 = vcmask 138240
        %v488 = vsel %vm487, %v484, %v486
        %v492 = vmul.f32 %v216, %v484
        %v493 = vmul.f32 %v217, %v488
        %v494 = vmul.f32 %v486, 0.0
        %498 = vrot.lane.b32.xlu0 %v492, 94
        %v499 = vpop.permute.xlu0 %498
        %500 = vrot.lane.b32.xlu0 %v493, 94
        %v501 = vpop.permute.xlu0 %500
        %502 = vrot.lane.b32.xlu0 %v494, 94
        %v503 = vpop.permute.xlu0 %502
        %vm504 = vcmask 769024
        %v505 = vsel %vm504, %v499, %v501
        %v506 = vsel %vm504, %v501, %v503
        %v510 = vadd.f32 %v474, %v499
        %v511 = vadd.f32 %v475, %v505
        %v512 = vadd.f32 %v476, %v506
        %v513 = vld [vmem:[%s2] sm:$0xff]
        %515 = vset.pattern.permute.xlu0 0
        %516 = vperm.xlu0 %515, %v513
        %v517 = vpop.permute.xlu0 %516
        %v519 = vperm.slane %v510, 0
        %v520 = vperm.slane %v511, 0
        %v521 = vperm.slane %v512, 0
        %v522 = vmul.f32 %v517, %v519
        %v523 = vmul.f32 %v517, %v520
        %v524 = vmul.f32 %v517, %v521
        %v525 = vadd.f32 %v522, 0.0
        %v526 = vadd.f32 %v523, 0.0
        %v527 = vadd.f32 %v524, 0.0
        %528 = vset.pattern.permute.xlu0 1
        %529 = vperm.xlu0 %528, %v513
        %v530 = vpop.permute.xlu0 %529
        %v532 = vperm.slane %v510, 1
        %v533 = vperm.slane %v511, 1
        %v534 = vperm.slane %v512, 1
        %v535 = vmul.f32 %v530, %v532
        %v536 = vmul.f32 %v530, %v533
        %v537 = vmul.f32 %v530, %v534
        %v538 = vadd.f32 %v525, %v535
        %v539 = vadd.f32 %v526, %v536
        %v540 = vadd.f32 %v527, %v537
        %541 = vset.pattern.permute.xlu0 2
        %542 = vperm.xlu0 %541, %v513
        %v543 = vpop.permute.xlu0 %542
        %v545 = vperm.slane %v510, 2
        %v546 = vperm.slane %v511, 2
        %v547 = vperm.slane %v512, 2
        %v548 = vmul.f32 %v543, %v545
        %v549 = vmul.f32 %v543, %v546
        %v550 = vmul.f32 %v543, %v547
        %v551 = vadd.f32 %v538, %v548
        %v552 = vadd.f32 %v539, %v549
        %v553 = vadd.f32 %v540, %v550
        %554 = vset.pattern.permute.xlu0 3
        %555 = vperm.xlu0 %554, %v513
        %v556 = vpop.permute.xlu0 %555
        %v558 = vperm.slane %v510, 3
        %v559 = vperm.slane %v511, 3
        %v560 = vperm.slane %v512, 3
        %v561 = vmul.f32 %v556, %v558
        %v562 = vmul.f32 %v556, %v559
        %v563 = vmul.f32 %v556, %v560
        %v564 = vadd.f32 %v551, %v561
        %v565 = vadd.f32 %v552, %v562
        %v566 = vadd.f32 %v553, %v563
        %v567 = vld [vmem:[%s3] sm:$0xff]
        %569 = vset.pattern.permute.xlu0 0
        %570 = vperm.xlu0 %569, %v567
        %v571 = vpop.permute.xlu0 %570
        %v573 = vadd.f32 %v564, %v571
        %v574 = vadd.f32 %v565, %v571
        %v575 = vadd.f32 %v566, %v571
        %v576 = vmax.f32 %v573, 0.0
        %v577 = vmax.f32 %v574, 0.0
        %v578 = vmax.f32 %v575, 0.0
        %582 = vrot.lane.b32.xlu0 %v576, 17
        %v583 = vpop.permute.xlu0 %582
        %584 = vrot.lane.b32.xlu0 %v577, 17
        %v585 = vpop.permute.xlu0 %584
        %586 = vrot.lane.b32.xlu0 %v578, 17
        %v587 = vpop.permute.xlu0 %586
        %v588 = vsel %vm487, %v583, %v585
        %v589 = vsel %vm487, %v585, %v587
        %592 = vst [vmem:[%s207] sm:$0xff] %v588
        %593 = vst [vmem:[%s207 + $0x8] sm:$0xff] %v589
        %s594 = sand.u32 %s116, 1
        %s595 = scalar_lea.sflag [#allocation4], %s594
        %s596 = sand.u32 %s116, 1
        %s597 = smul.addr %s596, 16
        %s598 = scalar_lea.vmem [#allocation5], %s597
        // Predicated region
        $region41: #{tpu_custom_call.1} parent=35 // pred_check
          %p599 = pneg %p126
        $region42: #{tpu_custom_call.1} parent=35 // pred_check_branch
          %601 = sbr.rel (%p599) target = $region44
        $region43: #{tpu_custom_call.1} parent=35 // pred_region
          %603 = vsyncadd %s595, 0
          %s604 = smul.addr %s19, 2
          %s605 = smul.addr %s604, 8
          %s606 = scalar_lea.hbm %s4, %s605
          %s608 = sshll.u32 %s598, 4
          %s609 = int_to_ptr.vmem [resolvable:$true] %s608
          %s610 = sshll.u32 %s606, 4
          %s611 = int_to_ptr.hbm [resolvable:$true] %s610
          %613 = dma.vmem_to_hbm [thread:$0]  %s609, 256, %s611, %s595
        $region44: #{tpu_custom_call.1} parent=35 // pred_fallthru
          _
      $region36: #{tpu_custom_call.1} parent=5 // pred_fallthru
        _
      %p614 = scmp.le.s32.totalorder 2, %s14
      // Predicated region
      $region45: #{tpu_custom_call.1} parent=5 // pred_check
        %p615 = pneg %p614
      $region46: #{tpu_custom_call.1} parent=5 // pred_check_branch
        %617 = sbr.rel (%p615) target = $region48
      $region47: #{tpu_custom_call.1} parent=5 // pred_region
        %s618 = ssub.s32 %s14, 2
        // Predicated region
        $region49: #{tpu_custom_call.1} parent=47 // pred_check
          %p619 = pneg %p132
        $region50: #{tpu_custom_call.1} parent=47 // pred_check_branch
          %621 = sbr.rel (%p619) target = $region52
        $region51: #{tpu_custom_call.1} parent=47 // pred_region
          %s622 = sand.u32 %s117, 1
          %s623 = scalar_lea.sflag [#allocation4], %s622
          %s624 = sand.u32 %s117, 1
          %s625 = smul.addr %s624, 16
          %s626 = scalar_lea.vmem [#allocation5], %s625
          %628 = dma.done %s623, 256
        $region52: #{tpu_custom_call.1} parent=47 // pred_fallthru
          _
      $region48: #{tpu_custom_call.1} parent=5 // pred_fallthru
        _
    $region6: #{tpu_custom_call.1} parent=1 // loop_footer
      %s18 = sadd.s32 1, %s14
    $region7: #{tpu_custom_call.1} parent=1 // loop_footer_branch
      %13 = sbr.rel target = $region3
    $region8: #{tpu_custom_call.1} parent=1 // loop_exit
      _
    %629 = vsyncpa [#allocation3], 1
    %s630 = scalar_lea.sflag [#allocation3], 1
    %631 = vsyncpa %s630, 1
    %632 = vsyncpa [#allocation4], 1
    %s633 = scalar_lea.sflag [#allocation4], 1
    %634 = vsyncpa %s633, 1

</llo_original>
